<compile_context>
chip_gen: v5e
topology: v5e:2x2
jax: 0.10.0
libtpu: 0.0.40
codegen_flags: <defaults>
</compile_context>

<pallas_src>
import math
from functools import partial

import jax
import jax.numpy as jnp
from jax import lax
from jax.experimental import pallas as pl
from jax.experimental.pallas import tpu as pltpu


def _round_up(x, m):
    return ((x + m - 1) // m) * m


# A @ B^T contraction (MXU-native "NT" form, as used by flash attention).
_NT_DIMS = (((1,), (1,)), ((), ()))

# Number of output rows in the transposed result slab (full sublane group;
# rows 0/1 hold q1/q2, rows 2..7 are zero padding).
_NQ = 8

# Max batch-tile rows. Per-step VMEM is tiny (inputs are ~16 lanes wide), so
# big tiles just amortise grid-step overhead on the 128 MiB-VMEM parts.
_TB_MAX = 2048


def _qnet_fused_kernel(s_ref, a_ref,
                       ws_ref, wa_ref, b1_ref,
                       w2_ref, b2_ref,
                       w3t_ref, b3t_ref,
                       q_ref, *, split_l2):
    # ---- Layer 1 of BOTH heads, fused along the lane-padded N dim ----
    # torch.cat([state, action], 1) is realised as a row-split of the fused
    # layer-1 weight, so the concatenated input is never materialised and no
    # unaligned (12+4)-lane concat is needed inside the kernel.
    s = s_ref[...].astype(jnp.bfloat16)
    a = a_ref[...].astype(jnp.bfloat16)
    h = (jnp.dot(s, ws_ref[...], preferred_element_type=jnp.float32)
         + jnp.dot(a, wa_ref[...], preferred_element_type=jnp.float32)
         + b1_ref[...])
    h = jnp.maximum(h, 0.0).astype(jnp.bfloat16)   # ReLU in fp32, MXU feed bf16

    # ---- Layer 2 ----
    if split_l2:
        # Large hidden: two lane-aligned Hp x Hp matmuls on stacked weights
        # instead of a half-zero (2Hp x 2Hp) block-diagonal matmul.
        hp = w2_ref.shape[1]
        g1 = jnp.dot(h[:, :hp], w2_ref[0], preferred_element_type=jnp.float32)
        g2 = jnp.dot(h[:, hp:], w2_ref[1], preferred_element_type=jnp.float32)
        g1 = jnp.maximum(g1 + b2_ref[:, :hp], 0.0).astype(jnp.bfloat16)
        g2 = jnp.maximum(g2 + b2_ref[:, hp:], 0.0).astype(jnp.bfloat16)
        # ---- Layer 3 (both heads), produced directly in (NQ, tb) layout ----
        qt = (lax.dot_general(w3t_ref[:, :hp], g1, _NT_DIMS,
                              preferred_element_type=jnp.float32)
              + lax.dot_general(w3t_ref[:, hp:], g2, _NT_DIMS,
                                preferred_element_type=jnp.float32))
    else:
        # Small hidden: one lane-dense block-diagonal matmul (2H padded to 128).
        g = (jnp.dot(h, w2_ref[...], preferred_element_type=jnp.float32)
             + b2_ref[...])
        g = jnp.maximum(g, 0.0).astype(jnp.bfloat16)
        qt = lax.dot_general(w3t_ref[...], g, _NT_DIMS,
                             preferred_element_type=jnp.float32)

    # Lane-dense transposed store: a handful of fully populated lane rows
    # instead of tb/8 lane-masked (tb, 2) stores.
    q_ref[...] = qt + b3t_ref[...]


def qnetwork_forward(state, action, packed):
    """state: [B, num_inputs], action: [B, num_actions] -> (q1 [B,1], q2 [B,1])."""
    B, num_inputs = state.shape
    num_actions = action.shape[1]
    W = packed["b1"].shape[1]                   # lane-padded fused hidden width
    split_l2 = packed["w2"].ndim == 3

    # Batch tiling:
    #  * small B: single full-batch tile (block == full array is always legal)
    #  * large B: >= 2 tiles whose width is a multiple of 128 so (a) the
    #    transposed (NQ, tb) output block is lane-legal and (b) the "parallel"
    #    grid axis gives both v7x TensorCores work; capped at _TB_MAX.
    if B <= 256:
        tb = _round_up(B, 8)
    else:
        tb = min(_TB_MAX, _round_up(pl.cdiv(B, 2), 128))
    bp = _round_up(B, tb)
    if bp != B:
        state = jnp.pad(state, ((0, bp - B), (0, 0)))
        action = jnp.pad(action, ((0, bp - B), (0, 0)))
    grid = (bp // tb,)

    def _const(arr):
        # Weights/biases: same block every grid step -> fetched once, resident.
        shape = arr.shape
        return pl.BlockSpec(shape, lambda i, s=shape: (0,) * len(s))
    # NOTE: pl.Buffered(1) on the constant specs would halve their resident
    # VMEM, but with the non-block-diagonal layer 2 the packed weights are
    # small enough that default buffering is kept for robustness.

    weight_bytes = sum(int(v.size) * v.dtype.itemsize for v in packed.values())
    act_bytes = 2 * tb * (num_inputs + num_actions) * 4 + 2 * _NQ * tb * 4
    inter_bytes = 6 * tb * W * 4                   # fp32/bf16 temporaries
    vmem_limit = int(min(100 * 2**20,
                         max(32 * 2**20,
                             2 * weight_bytes + act_bytes + inter_bytes
                             + (4 << 20))))

    flops = 2 * bp * int(packed["ws"].size + packed["wa"].size
                         + packed["w2"].size + packed["w3t"].size)
    bytes_accessed = 4 * bp * (num_inputs + num_actions + _NQ) + weight_bytes

    q = pl.pallas_call(
        partial(_qnet_fused_kernel, split_l2=split_l2),
        out_shape=jax.ShapeDtypeStruct((_NQ, bp), jnp.float32),
        grid=grid,
        in_specs=[
            pl.BlockSpec((tb, num_inputs), lambda i: (i, 0)),
            pl.BlockSpec((tb, num_actions), lambda i: (i, 0)),
            _const(packed["ws"]),
            _const(packed["wa"]),
            _const(packed["b1"]),
            _const(packed["w2"]),
            _const(packed["b2"]),
            _const(packed["w3t"]),
            _const(packed["b3t"]),
        ],
        out_specs=pl.BlockSpec((_NQ, tb), lambda i: (0, i)),
        compiler_params=pltpu.CompilerParams(
            dimension_semantics=("parallel",),
            vmem_limit_bytes=vmem_limit),
        cost_estimate=pl.CostEstimate(
            flops=flops, transcendentals=0, bytes_accessed=bytes_accessed),
    )(state, action,
      packed["ws"], packed["wa"], packed["b1"],
      packed["w2"], packed["b2"],
      packed["w3t"], packed["b3t"])

    q1 = q[0, :B].reshape(B, 1)
    q2 = q[1, :B].reshape(B, 1)
    return q1, q2


# ------------------------------ parameters ---------------------------------

def _xavier_uniform(key, fan_in, fan_out):
    # torch.nn.init.xavier_uniform_ (gain=1); stored pre-transposed [in, out].
    limit = math.sqrt(6.0 / (fan_in + fan_out))
    return jax.random.uniform(key, (fan_in, fan_out), jnp.float32, -limit, limit)


def init_qnetwork_params(key, num_inputs, num_actions, hidden_dim):
    """Parameters matching the PyTorch module (6 Linear layers, zero biases)."""
    d_in = num_inputs + num_actions
    keys = jax.random.split(key, 6)
    return {
        "w1": _xavier_uniform(keys[0], d_in, hidden_dim),
        "b1": jnp.zeros((1, hidden_dim), jnp.float32),
        "w2": _xavier_uniform(keys[1], hidden_dim, hidden_dim),
        "b2": jnp.zeros((1, hidden_dim), jnp.float32),
        "w3": _xavier_uniform(keys[2], hidden_dim, 1),
        "b3": jnp.zeros((1, 1), jnp.float32),
        "w4": _xavier_uniform(keys[3], d_in, hidden_dim),
        "b4": jnp.zeros((1, hidden_dim), jnp.float32),
        "w5": _xavier_uniform(keys[4], hidden_dim, hidden_dim),
        "b5": jnp.zeros((1, hidden_dim), jnp.float32),
        "w6": _xavier_uniform(keys[5], hidden_dim, 1),
        "b6": jnp.zeros((1, 1), jnp.float32),
    }


def pack_qnetwork_params(params, num_inputs, num_actions):
    """Fuse both Q-heads into lane-padded, MXU-friendly packed arrays."""
    H = params["w1"].shape[1]
    ni = num_inputs

    if H <= 64:
        # Both heads fit one 128-lane group: fuse along N, pad 2H -> 128;
        # layer 2 stays a single block-diagonal matmul.
        W = _round_up(2 * H, 128)
        off2 = H
        split_l2 = False
    else:
        # Per-head width padded to a 128-multiple so head boundaries are
        # lane-aligned; layer 2 becomes two stacked Hp x Hp matmuls.
        hp = _round_up(H, 128)
        W = 2 * hp
        off2 = hp
        split_l2 = True

    def _wide(w_a, w_b, rows):
        out = jnp.zeros((rows, W), jnp.float32)
        out = out.at[:, 0:H].set(w_a)
        out = out.at[:, off2:off2 + H].set(w_b)
        return out

    ws = _wide(params["w1"][:ni], params["w4"][:ni], ni)          # [ni, W]
    wa = _wide(params["w1"][ni:], params["w4"][ni:],
               params["w1"].shape[0] - ni)                        # [na, W]
    b1 = _wide(params["b1"], params["b4"], 1)                     # [1, W]
    b2 = _wide(params["b2"], params["b5"], 1)                     # [1, W]

    if split_l2:
        hp = off2
        w2 = jnp.zeros((2, hp, hp), jnp.float32)
        w2 = w2.at[0, :H, :H].set(params["w2"])
        w2 = w2.at[1, :H, :H].set(params["w5"])
    else:
        w2 = jnp.zeros((W, W), jnp.float32)
        w2 = w2.at[0:H, 0:H].set(params["w2"])
        w2 = w2.at[off2:off2 + H, off2:off2 + H].set(params["w5"])

    # Output layer stored transposed, padded to a full sublane group: rows 0/1
    # are the two heads, rows 2..7 zero -> lane-dense (NQ, tb) result slab.
    w3t = jnp.zeros((_NQ, W), jnp.float32)
    w3t = w3t.at[0, 0:H].set(params["w3"][:, 0])
    w3t = w3t.at[1, off2:off2 + H].set(params["w6"][:, 0])
    b3t = jnp.zeros((_NQ, 1), jnp.float32)
    b3t = b3t.at[0, 0].set(params["b3"][0, 0])
    b3t = b3t.at[1, 0].set(params["b6"][0, 0])

    return {
        "ws": ws.astype(jnp.bfloat16),
        "wa": wa.astype(jnp.bfloat16),
        "b1": b1,
        "w2": w2.astype(jnp.bfloat16),
        "b2": b2,
        "w3t": w3t.astype(jnp.bfloat16),
        "b3t": b3t,
    }


# ------------------------------ references ---------------------------------

def _reference_forward_fp32(state, action, params):
    xu = jnp.concatenate([state, action], axis=1)
    h = jax.nn.relu(xu @ params["w1"] + params["b1"])
    h = jax.nn.relu(h @ params["w2"] + params["b2"])
    q1 = h @ params["w3"] + params["b3"]
    g = jax.nn.relu(xu @ params["w4"] + params["b4"])
    g = jax.nn.relu(g @ params["w5"] + params["b5"])
    q2 = g @ params["w6"] + params["b6"]
    return q1, q2


def _reference_forward_matched(state, action, packed):
    # Same math as the kernel (bf16 weights/activations, fp32 accumulation).
    dot = partial(jnp.dot, preferred_element_type=jnp.float32)
    s = state.astype(jnp.bfloat16)
    a = action.astype(jnp.bfloat16)
    h = dot(s, packed["ws"]) + dot(a, packed["wa"]) + packed["b1"]
    h = jnp.maximum(h, 0.0).astype(jnp.bfloat16)
    w2 = packed["w2"]
    if w2.ndim == 3:
        hp = w2.shape[1]
        g1 = jnp.maximum(dot(h[:, :hp], w2[0]) + packed["b2"][:, :hp], 0.0)
        g2 = jnp.maximum(dot(h[:, hp:], w2[1]) + packed["b2"][:, hp:], 0.0)
        g = jnp.concatenate([g1, g2], axis=1).astype(jnp.bfloat16)
    else:
        g = jnp.maximum(dot(h, w2) + packed["b2"], 0.0).astype(jnp.bfloat16)
    q = dot(g, packed["w3t"].T) + packed["b3t"].T
    return q[:, 0:1], q[:, 1:2]


# --------------------------------- demo -------------------------------------

def _check(num_inputs, num_actions, hidden_dim, batch, key, check_fp32):
    k_params, k_state, k_action = jax.random.split(key, 3)
    params = init_qnetwork_params(k_params, num_inputs, num_actions, hidden_dim)
    packed = pack_qnetwork_params(params, num_inputs, num_actions)

    state = jax.random.normal(k_state, (batch, num_inputs), jnp.float32)
    action = jax.random.normal(k_action, (batch, num_actions), jnp.float32)

    q1, q2 = qnetwork_forward(state, action, packed)
    jax.block_until_ready((q1, q2))
    assert q1.shape == (batch, 1) and q2.shape == (batch, 1)

    # Matched-precision reference (same bf16 cast points): tight check.
    m1, m2 = _reference_forward_matched(state, action, packed)
    assert jnp.allclose(q1, m1, atol=2e-2, rtol=2e-2), "matched ref mismatch (q1)"
    assert jnp.allclose(q2, m2, atol=2e-2, rtol=2e-2), "matched ref mismatch (q2)"

    if check_fp32:
        # Full-fp32 torch-equivalent reference: loose check (bf16 weights).
        r1, r2 = _reference_forward_fp32(state, action, params)
        assert jnp.allclose(q1, r1, atol=1e-1, rtol=1e-1), "fp32 ref mismatch (q1)"
        assert jnp.allclose(q2, r2, atol=1e-1, rtol=1e-1), "fp32 ref mismatch (q2)"


if __name__ == "__main__":
    key = jax.random.PRNGKey(0)
    k0, k1, k2 = jax.random.split(key, 3)

    # Small default sizes (block-diagonal layer-2 path, single-tile grid).
    _check(num_inputs=12, num_actions=4, hidden_dim=32, batch=8,
           key=k0, check_fp32=True)
    # Larger batch: multi-step "parallel" grid with lane-dense output blocks.
    _check(num_inputs=12, num_actions=4, hidden_dim=32, batch=300,
           key=k1, check_fp32=True)
    # Larger hidden: split (stacked Hp x Hp) layer-2 path.
    _check(num_inputs=12, num_actions=4, hidden_dim=256, batch=64,
           key=k2, check_fp32=False)

    print("KERNEL_OK")
</pallas_src>

<mosaic_0001>
module attributes {stable_mosaic.version = 11 : i64} {
  func.func @_qnet_fused_kernel(%arg0: i32, %arg1: memref<8x12xf32, #tpu.memory_space<vmem>>, %arg2: memref<8x4xf32, #tpu.memory_space<vmem>>, %arg3: memref<12x128xbf16, #tpu.memory_space<vmem>>, %arg4: memref<4x128xbf16, #tpu.memory_space<vmem>>, %arg5: memref<1x128xf32, #tpu.memory_space<vmem>>, %arg6: memref<128x128xbf16, #tpu.memory_space<vmem>>, %arg7: memref<1x128xf32, #tpu.memory_space<vmem>>, %arg8: memref<8x128xbf16, #tpu.memory_space<vmem>>, %arg9: memref<8x1xf32, #tpu.memory_space<vmem>>, %arg10: memref<8x8xf32, #tpu.memory_space<vmem>>) attributes {dimension_semantics = [#tpu.dimension_semantics<parallel>], iteration_bounds = array<i64: 1>, scalar_prefetch = 0 : i64, scratch_operands = 0 : i64, tpu.core_type = #tpu.core_type<tc>, window_params = [{transform_indices = @transform_0, window_bounds = array<i64: 8, 12>}, {transform_indices = @transform_1, window_bounds = array<i64: 8, 4>}, {pipeline_mode = #tpu.pipeline_mode<synchronous>, transform_indices = @transform_2, window_bounds = array<i64: 12, 128>}, {pipeline_mode = #tpu.pipeline_mode<synchronous>, transform_indices = @transform_3, window_bounds = array<i64: 4, 128>}, {pipeline_mode = #tpu.pipeline_mode<synchronous>, transform_indices = @transform_4, window_bounds = array<i64: 1, 128>}, {pipeline_mode = #tpu.pipeline_mode<synchronous>, transform_indices = @transform_5, window_bounds = array<i64: 128, 128>}, {pipeline_mode = #tpu.pipeline_mode<synchronous>, transform_indices = @transform_6, window_bounds = array<i64: 1, 128>}, {pipeline_mode = #tpu.pipeline_mode<synchronous>, transform_indices = @transform_7, window_bounds = array<i64: 8, 128>}, {pipeline_mode = #tpu.pipeline_mode<synchronous>, transform_indices = @transform_8, window_bounds = array<i64: 8, 1>}, {transform_indices = @transform_9, window_bounds = array<i64: 8, 8>}]} {
    %c0 = arith.constant 0 : index
    %c0_0 = arith.constant 0 : index
    %0 = vector.load %arg1[%c0, %c0_0] : memref<8x12xf32, #tpu.memory_space<vmem>>, vector<8x12xf32>
    %1 = arith.truncf %0 : vector<8x12xf32> to vector<8x12xbf16>
    %c0_1 = arith.constant 0 : index
    %c0_2 = arith.constant 0 : index
    %2 = vector.load %arg2[%c0_1, %c0_2] : memref<8x4xf32, #tpu.memory_space<vmem>>, vector<8x4xf32>
    %3 = arith.truncf %2 : vector<8x4xf32> to vector<8x4xbf16>
    %c0_3 = arith.constant 0 : index
    %c0_4 = arith.constant 0 : index
    %4 = vector.load %arg3[%c0_3, %c0_4] : memref<12x128xbf16, #tpu.memory_space<vmem>>, vector<12x128xbf16>
    %cst = arith.constant dense<0.000000e+00> : vector<8x128xf32>
    %5 = tpu.matmul %1, %4, %cst {dimension_numbers = #tpu.dot_dimension_numbers<[1], [0], [0], [1], [0, 0, 1, 1], [], []>} : vector<8x12xbf16>, vector<12x128xbf16>, vector<8x128xf32> -> vector<8x128xf32>
    %c0_5 = arith.constant 0 : index
    %c0_6 = arith.constant 0 : index
    %6 = vector.load %arg4[%c0_5, %c0_6] : memref<4x128xbf16, #tpu.memory_space<vmem>>, vector<4x128xbf16>
    %cst_7 = arith.constant dense<0.000000e+00> : vector<8x128xf32>
    %7 = tpu.matmul %3, %6, %cst_7 {dimension_numbers = #tpu.dot_dimension_numbers<[1], [0], [0], [1], [0, 0, 1, 1], [], []>} : vector<8x4xbf16>, vector<4x128xbf16>, vector<8x128xf32> -> vector<8x128xf32>
    %8 = arith.addf %5, %7 : vector<8x128xf32>
    %c0_8 = arith.constant 0 : index
    %c0_9 = arith.constant 0 : index
    %9 = vector.load %arg5[%c0_8, %c0_9] : memref<1x128xf32, #tpu.memory_space<vmem>>, vector<1x128xf32>
    %10 = vector.broadcast %9 : vector<1x128xf32> to vector<8x128xf32>
    %11 = arith.addf %8, %10 : vector<8x128xf32>
    %cst_10 = arith.constant 0.000000e+00 : f32
    %12 = vector.broadcast %cst_10 : f32 to vector<8x128xf32>
    %13 = arith.maximumf %11, %12 : vector<8x128xf32>
    %14 = arith.truncf %13 : vector<8x128xf32> to vector<8x128xbf16>
    %c0_11 = arith.constant 0 : index
    %c0_12 = arith.constant 0 : index
    %15 = vector.load %arg6[%c0_11, %c0_12] : memref<128x128xbf16, #tpu.memory_space<vmem>>, vector<128x128xbf16>
    %cst_13 = arith.constant dense<0.000000e+00> : vector<8x128xf32>
    %16 = tpu.matmul %14, %15, %cst_13 {dimension_numbers = #tpu.dot_dimension_numbers<[1], [0], [0], [1], [0, 0, 1, 1], [], []>} : vector<8x128xbf16>, vector<128x128xbf16>, vector<8x128xf32> -> vector<8x128xf32>
    %c0_14 = arith.constant 0 : index
    %c0_15 = arith.constant 0 : index
    %17 = vector.load %arg7[%c0_14, %c0_15] : memref<1x128xf32, #tpu.memory_space<vmem>>, vector<1x128xf32>
    %18 = vector.broadcast %17 : vector<1x128xf32> to vector<8x128xf32>
    %19 = arith.addf %16, %18 : vector<8x128xf32>
    %cst_16 = arith.constant 0.000000e+00 : f32
    %20 = vector.broadcast %cst_16 : f32 to vector<8x128xf32>
    %21 = arith.maximumf %19, %20 : vector<8x128xf32>
    %22 = arith.truncf %21 : vector<8x128xf32> to vector<8x128xbf16>
    %c0_17 = arith.constant 0 : index
    %c0_18 = arith.constant 0 : index
    %23 = vector.load %arg8[%c0_17, %c0_18] : memref<8x128xbf16, #tpu.memory_space<vmem>>, vector<8x128xbf16>
    %cst_19 = arith.constant dense<0.000000e+00> : vector<8x8xf32>
    %24 = tpu.matmul %23, %22, %cst_19 {dimension_numbers = #tpu.dot_dimension_numbers<[1], [1], [0], [0], [0, 0, 1, 0], [], []>} : vector<8x128xbf16>, vector<8x128xbf16>, vector<8x8xf32> -> vector<8x8xf32>
    %c0_20 = arith.constant 0 : index
    %c0_21 = arith.constant 0 : index
    %25 = vector.load %arg9[%c0_20, %c0_21] : memref<8x1xf32, #tpu.memory_space<vmem>>, vector<8x1xf32>
    %26 = vector.broadcast %25 : vector<8x1xf32> to vector<8x8xf32>
    %27 = arith.addf %24, %26 : vector<8x8xf32>
    %c0_22 = arith.constant 0 : index
    %c0_23 = arith.constant 0 : index
    %28 = vector.load %arg10[%c0_22, %c0_23] : memref<8x8xf32, #tpu.memory_space<vmem>>, vector<8x8xf32>
    tpu.vector_store %arg10[%c0_22, %c0_23], %27 {strides = array<i32>} : memref<8x8xf32, #tpu.memory_space<vmem>>, vector<8x8xf32>,
    return
  }
  func.func @transform_0(%arg0: i32) -> (i32, i32) {
    %c0_i32 = arith.constant 0 : i32
    %c0_i32_0 = arith.constant 0 : i32
    return %arg0, %c0_i32 : i32, i32
  }
  func.func @transform_1(%arg0: i32) -> (i32, i32) {
    %c0_i32 = arith.constant 0 : i32
    %c0_i32_0 = arith.constant 0 : i32
    return %arg0, %c0_i32 : i32, i32
  }
  func.func @transform_2(%arg0: i32) -> (i32, i32) {
    %c0_i32 = arith.constant 0 : i32
    %c0_i32_0 = arith.constant 0 : i32
    %c0_i32_1 = arith.constant 0 : i32
    return %c0_i32, %c0_i32_0 : i32, i32
  }
  func.func @transform_3(%arg0: i32) -> (i32, i32) {
    %c0_i32 = arith.constant 0 : i32
    %c0_i32_0 = arith.constant 0 : i32
    %c0_i32_1 = arith.constant 0 : i32
    return %c0_i32, %c0_i32_0 : i32, i32
  }
  func.func @transform_4(%arg0: i32) -> (i32, i32) {
    %c0_i32 = arith.constant 0 : i32
    %c0_i32_0 = arith.constant 0 : i32
    %c0_i32_1 = arith.constant 0 : i32
    return %c0_i32, %c0_i32_0 : i32, i32
  }
  func.func @transform_5(%arg0: i32) -> (i32, i32) {
    %c0_i32 = arith.constant 0 : i32
    %c0_i32_0 = arith.constant 0 : i32
    %c0_i32_1 = arith.constant 0 : i32
    return %c0_i32, %c0_i32_0 : i32, i32
  }
  func.func @transform_6(%arg0: i32) -> (i32, i32) {
    %c0_i32 = arith.constant 0 : i32
    %c0_i32_0 = arith.constant 0 : i32
    %c0_i32_1 = arith.constant 0 : i32
    return %c0_i32, %c0_i32_0 : i32, i32
  }
  func.func @transform_7(%arg0: i32) -> (i32, i32) {
    %c0_i32 = arith.constant 0 : i32
    %c0_i32_0 = arith.constant 0 : i32
    %c0_i32_1 = arith.constant 0 : i32
    return %c0_i32, %c0_i32_0 : i32, i32
  }
  func.func @transform_8(%arg0: i32) -> (i32, i32) {
    %c0_i32 = arith.constant 0 : i32
    %c0_i32_0 = arith.constant 0 : i32
    %c0_i32_1 = arith.constant 0 : i32
    return %c0_i32, %c0_i32_0 : i32, i32
  }
  func.func @transform_9(%arg0: i32) -> (i32, i32) {
    %c0_i32 = arith.constant 0 : i32
    %c0_i32_0 = arith.constant 0 : i32
    return %c0_i32, %arg0 : i32, i32
  }
}

</mosaic_0001>

<llo_original>
// kernel: tpu_custom_call.1
$region0: #{tpu_custom_call.1}
  #allocation0 [shape = 'u32[]', space=smem, size = 0x4, offset = 0x4, fixed_abs, tag = 'smem constant byte address 0x4 - core index']
  #allocation1 [shape = 'u32[72,128]{1,0:T(1,128)}', space=vmem, size = 0x9000, scoped, tag = 'internal scratch']
  %s0 = inlined_call_operand.vmem [shape: f32[8,12], index: 0, kind: input, shape index: {}]
  %s1 = inlined_call_operand.vmem [shape: f32[8,4], index: 1, kind: input, shape index: {}]
  %s2 = inlined_call_operand.vmem [shape: bf16[12,128], index: 2, kind: input, shape index: {}]
  %s3 = inlined_call_operand.vmem [shape: bf16[4,128], index: 3, kind: input, shape index: {}]
  %s4 = inlined_call_operand.vmem [shape: f32[1,128], index: 4, kind: input, shape index: {}]
  %s5 = inlined_call_operand.hbm [shape: bf16[128,128], index: 5, kind: input, shape index: {}]
  %s6 = inlined_call_operand.vmem [shape: f32[1,128], index: 6, kind: input, shape index: {}]
  %s7 = inlined_call_operand.vmem [shape: bf16[8,128], index: 7, kind: input, shape index: {}]
  %s8 = inlined_call_operand.vmem [shape: f32[8,1], index: 8, kind: input, shape index: {}]
  %s9 = inlined_call_operand.hbm [shape: f32[8,8], index: 9, kind: output, shape index: {}]
  %s10 = sld [smem:[#allocation0]]
  $region50: #{tpu_custom_call.1} parent=0
    _
  %s12 = ssub.s32 1, %s10
  %s13 = scalar_select 0, %s12, %s10
  $region1: #{tpu_custom_call.1} parent=0
    #allocation2 [shape = 'u8[32768]{0}', space=vmem, size = 0x8000, scoped, tag = 'input window, operand 5, single buffered']
    #allocation3 [shape = 's32[1]{0}', space=sflag, size = 0x4, scoped, tag = 'scoped memory for tpu_custom_call.1']
    #allocation4 [shape = 's32[1]{0}', space=sflag, size = 0x4, scoped, tag = 'scoped memory for tpu_custom_call.1']
    #allocation5 [shape = 'u8[4096]{0}', space=vmem, size = 0x1000, scoped, tag = 'output window, operand 0, single buffered']
    %14 = vsyncpa [#allocation3], 0
    %15 = vsyncpa [#allocation4], 0
    // Predicated region
    $region2: #{tpu_custom_call.1} parent=1 // pred_check
      _
    $region3: #{tpu_custom_call.1} parent=1 // pred_check_branch
      %17 = sbr.rel (0) target = $region5
    $region4: #{tpu_custom_call.1} parent=1 // pred_region
      _
    $region5: #{tpu_custom_call.1} parent=1 // pred_fallthru
      _
    // Predicated region
    $region6: #{tpu_custom_call.1} parent=1 // pred_check
      _
    $region7: #{tpu_custom_call.1} parent=1 // pred_check_branch
      %19 = sbr.rel (0) target = $region9
    $region8: #{tpu_custom_call.1} parent=1 // pred_region
      _
    $region9: #{tpu_custom_call.1} parent=1 // pred_fallthru
      _
    // Predicated region
    $region10: #{tpu_custom_call.1} parent=1 // pred_check
      _
    $region11: #{tpu_custom_call.1} parent=1 // pred_check_branch
      %21 = sbr.rel (0) target = $region13
    $region12: #{tpu_custom_call.1} parent=1 // pred_region
      _
    $region13: #{tpu_custom_call.1} parent=1 // pred_fallthru
      _
    // Predicated region
    $region14: #{tpu_custom_call.1} parent=1 // pred_check
      _
    $region15: #{tpu_custom_call.1} parent=1 // pred_check_branch
      %23 = sbr.rel (0) target = $region17
    $region16: #{tpu_custom_call.1} parent=1 // pred_region
      _
    $region17: #{tpu_custom_call.1} parent=1 // pred_fallthru
      _
    // Predicated region
    $region18: #{tpu_custom_call.1} parent=1 // pred_check
      _
    $region19: #{tpu_custom_call.1} parent=1 // pred_check_branch
      %25 = sbr.rel (0) target = $region21
    $region20: #{tpu_custom_call.1} parent=1 // pred_region
      _
    $region21: #{tpu_custom_call.1} parent=1 // pred_fallthru
      _
    // Predicated region
    $region22: #{tpu_custom_call.1} parent=1 // pred_check
      _
    $region23: #{tpu_custom_call.1} parent=1 // pred_check_branch
      %27 = sbr.rel (0) target = $region25
    $region24: #{tpu_custom_call.1} parent=1 // pred_region
      %29 = vsyncadd [#allocation3], 0
      %s30 = sshll.u32 %s5, 4
      %s31 = int_to_ptr.hbm [resolvable:$true] %s30
      %s32 = sshll.u32 [#allocation2], 4
      %s33 = int_to_ptr.vmem [resolvable:$true] %s32
      %38 = dma.hbm_to_vmem [thread:$0]  %s31, 1024, %s33, [#allocation3], 64, 64, 4
    $region25: #{tpu_custom_call.1} parent=1 // pred_fallthru
      _
    // Predicated region
    $region26: #{tpu_custom_call.1} parent=1 // pred_check
      _
    $region27: #{tpu_custom_call.1} parent=1 // pred_check_branch
      %40 = sbr.rel (0) target = $region29
    $region28: #{tpu_custom_call.1} parent=1 // pred_region
      _
    $region29: #{tpu_custom_call.1} parent=1 // pred_fallthru
      _
    // Predicated region
    $region30: #{tpu_custom_call.1} parent=1 // pred_check
      _
    $region31: #{tpu_custom_call.1} parent=1 // pred_check_branch
      %42 = sbr.rel (0) target = $region33
    $region32: #{tpu_custom_call.1} parent=1 // pred_region
      _
    $region33: #{tpu_custom_call.1} parent=1 // pred_fallthru
      _
    // Predicated region
    $region34: #{tpu_custom_call.1} parent=1 // pred_check
      _
    $region35: #{tpu_custom_call.1} parent=1 // pred_check_branch
      %44 = sbr.rel (0) target = $region37
    $region36: #{tpu_custom_call.1} parent=1 // pred_region
      _
    $region37: #{tpu_custom_call.1} parent=1 // pred_fallthru
      _
    // Predicated region
    $region38: #{tpu_custom_call.1} parent=1 // pred_check
      _
    $region39: #{tpu_custom_call.1} parent=1 // pred_check_branch
      %46 = sbr.rel (0) target = $region41
    $region40: #{tpu_custom_call.1} parent=1 // pred_region
      %48 = dma.done [#allocation3], 1024
    $region41: #{tpu_custom_call.1} parent=1 // pred_fallthru
      _
    %v50 = vld [vmem:[%s0] sm:$0xff]
    %v51 = vpack.c.bf16 %v50, %v50
    %v52 = vld [vmem:[%s1] sm:$0xff]
    %v53 = vpack.c.bf16 %v52, %v52
    %v54 = vld [vmem:[%s2] sm:$0xf]
    %v55 = vld [vmem:[%s2 + $0x4] sm:$0x3]
    %v56 = vld [vmem:[%s3] sm:$0x3]
    %vm57 = vcmask 31744
    %v59 = vsel %vm57, %v53, 0
    %vm61 = vcmask 1041408
    %v63 = vsel %vm61, %v56, 0
    %65 = vmatpush.bf16.msra.mxu0 0
    %66 = vmatpush.bf16.msra.mxu0 0
    %67 = vmatpush.bf16.msra.mxu0 0
    %68 = vmatpush.bf16.msra.mxu0 0
    %69 = vmatpush.bf16.msra.mxu0 0
    %70 = vmatpush.bf16.msra.mxu0 0
    %71 = vmatpush.bf16.msra.mxu0 0
    %72 = vmatpush.bf16.msra.mxu0 %v63
    %73 = vmatmul.bf16.gmra.mxu0 %v59
    %v74 = vpop.f32.mrf.mxu0
    %v75 = vadd.f32 0.0, %v74
    %v76 = vpop.f32.mrf.mxu0
    %77 = vdwg.mxu0
    %v80 = vunpack.c.l.b16 %v54
    %v81 = vunpack.c.l.b16 %v55
    %v82 = vpack.c.b16 %v81, %v80
    %vm83 = vcmask 97280
    %v85 = vsel %vm83, %v51, 0
    %vm87 = vcmask 1045504
    %v89 = vsel %vm87, %v82, 0
    %91 = vmatpush.bf16.msra.mxu0 0
    %92 = vmatpush.bf16.msra.mxu0 0
    %93 = vmatpush.bf16.msra.mxu0 0
    %94 = vmatpush.bf16.msra.mxu0 0
    %95 = vmatpush.bf16.msra.mxu0 0
    %96 = vmatpush.bf16.msra.mxu0 0
    %97 = vmatpush.bf16.msra.mxu0 0
    %98 = vmatpush.bf16.msra.mxu0 %v89
    %99 = vmatmul.bf16.gmra.mxu0 %v85
    %v100 = vpop.f32.mrf.mxu0
    %v101 = vadd.f32 %v75, %v100
    %v102 = vpop.f32.mrf.mxu0
    %103 = vdwg.mxu0
    %v104 = vld [vmem:[%s4] sm:$0x1]
    %v106 = vperm.slane %v104, 0
    %v108 = vadd.f32 %v101, %v106
    %v109 = vmax.f32 %v108, 0.0
    %v110 = vpack.c.bf16 %v109, %v109
    %v111 = vld [vmem:[#allocation2] sm:$0xf]
    %v112 = vld [vmem:[#allocation2 + $0x4] sm:$0xf]
    %v113 = vld [vmem:[#allocation2 + $0x8] sm:$0xf]
    %v114 = vld [vmem:[#allocation2 + $0xc] sm:$0xf]
    %v115 = vld [vmem:[#allocation2 + $0x10] sm:$0xf]
    %v116 = vld [vmem:[#allocation2 + $0x14] sm:$0xf]
    %v117 = vld [vmem:[#allocation2 + $0x18] sm:$0xf]
    %v118 = vld [vmem:[#allocation2 + $0x1c] sm:$0xf]
    %v119 = vld [vmem:[#allocation2 + $0x20] sm:$0xf]
    %v120 = vld [vmem:[#allocation2 + $0x24] sm:$0xf]
    %v121 = vld [vmem:[#allocation2 + $0x28] sm:$0xf]
    %v122 = vld [vmem:[#allocation2 + $0x2c] sm:$0xf]
    %v123 = vld [vmem:[#allocation2 + $0x30] sm:$0xf]
    %v124 = vld [vmem:[#allocation2 + $0x34] sm:$0xf]
    %v125 = vld [vmem:[#allocation2 + $0x38] sm:$0xf]
    %v126 = vld [vmem:[#allocation2 + $0x3c] sm:$0xf]
    %v127 = vld [vmem:[%s6] sm:$0x1]
    %v129 = vperm.slane %v127, 0
    %v147 = vunpack.c.l.b16 %v111
    %v148 = vunpack.c.l.b16 %v112
    %v149 = vunpack.c.l.b16 %v113
    %v150 = vunpack.c.l.b16 %v114
    %v151 = vunpack.c.l.b16 %v115
    %v152 = vunpack.c.l.b16 %v116
    %v153 = vunpack.c.l.b16 %v117
    %v154 = vunpack.c.l.b16 %v118
    %v155 = vunpack.c.l.b16 %v119
    %v156 = vunpack.c.l.b16 %v120
    %v157 = vunpack.c.l.b16 %v121
    %v158 = vunpack.c.l.b16 %v122
    %v159 = vunpack.c.l.b16 %v123
    %v160 = vunpack.c.l.b16 %v124
    %v161 = vunpack.c.l.b16 %v125
    %v162 = vunpack.c.l.b16 %v126
    %v163 = vpack.c.b16 %v148, %v147
    %v164 = vpack.c.b16 %v150, %v149
    %v165 = vpack.c.b16 %v152, %v151
    %v166 = vpack.c.b16 %v154, %v153
    %v167 = vpack.c.b16 %v156, %v155
    %v168 = vpack.c.b16 %v158, %v157
    %v169 = vpack.c.b16 %v160, %v159
    %v170 = vpack.c.b16 %v162, %v161
    %179 = vmatpush.bf16.msra.mxu0 %v170
    %180 = vmatpush.bf16.msra.mxu0 %v169
    %181 = vmatpush.bf16.msra.mxu0 %v168
    %182 = vmatpush.bf16.msra.mxu0 %v167
    %183 = vmatpush.bf16.msra.mxu0 %v166
    %184 = vmatpush.bf16.msra.mxu0 %v165
    %185 = vmatpush.bf16.msra.mxu0 %v164
    %186 = vmatpush.bf16.msra.mxu0 %v163
    %187 = vmatmul.bf16.gmra.mxu0 %v110
    %v188 = vpop.f32.mrf.mxu0
    %v189 = vadd.f32 %v129, %v188
    %v190 = vpop.f32.mrf.mxu0
    %191 = vdwg.mxu0
    %v192 = vmax.f32 %v189, 0.0
    %v193 = vpack.c.bf16 %v192, %v192
    %v194 = vld [vmem:[%s7] sm:$0xf]
    %v195 = vld [vmem:[%s8] sm:$0xff]
    %197 = vset.pattern.permute.xlu0 0
    %198 = vperm.xlu0 %197, %v195
    %v199 = vpop.permute.xlu0 %198
    %201 = vmatpush.bf16.xpose.msra.mxu0 0
    %202 = vmatpush.bf16.xpose.msra.mxu0 0
    %203 = vmatpush.bf16.xpose.msra.mxu0 0
    %204 = vmatpush.bf16.xpose.msra.mxu0 0
    %205 = vmatpush.bf16.xpose.msra.mxu0 0
    %206 = vmatpush.bf16.xpose.msra.mxu0 0
    %207 = vmatpush.bf16.xpose.msra.mxu0 0
    %208 = vmatpush.bf16.xpose.msra.mxu0 %v193
    %209 = vmatmul.bf16.gmra.mxu0 %v194
    %v210 = vpop.f32.mrf.mxu0
    %v211 = vadd.f32 %v199, %v210
    %v212 = vpop.f32.mrf.mxu0
    %213 = vdwg.mxu0
    %vm214 = vcmask 64512
    %215 = vst.msk [vmem:[#allocation5] sm:$0xff] %vm214, %v211
    // Predicated region
    $region42: #{tpu_custom_call.1} parent=1 // pred_check
      _
    $region43: #{tpu_custom_call.1} parent=1 // pred_check_branch
      %217 = sbr.rel (0) target = $region45
    $region44: #{tpu_custom_call.1} parent=1 // pred_region
      %219 = vsyncadd [#allocation4], 0
      %s221 = sshll.u32 [#allocation5], 4
      %s222 = int_to_ptr.vmem [resolvable:$true] %s221
      %s223 = sshll.u32 %s9, 4
      %s224 = int_to_ptr.hbm [resolvable:$true] %s223
      %226 = dma.vmem_to_hbm [thread:$0]  %s222, 128, %s224, [#allocation4]
    $region45: #{tpu_custom_call.1} parent=1 // pred_fallthru
      _
    // Predicated region
    $region46: #{tpu_custom_call.1} parent=1 // pred_check
      _
    $region47: #{tpu_custom_call.1} parent=1 // pred_check_branch
      %228 = sbr.rel (0) target = $region49
    $region48: #{tpu_custom_call.1} parent=1 // pred_region
      %230 = dma.done [#allocation4], 128
    $region49: #{tpu_custom_call.1} parent=1 // pred_fallthru
      _
    %231 = vsyncpa [#allocation3], 1
    %232 = vsyncpa [#allocation4], 1

</llo_original>
